<compile_context>
chip_gen: v5e
topology: v5e:2x2
jax: 0.10.0
libtpu: 0.0.40
codegen_flags: <defaults>
</compile_context>

<pallas_src>
import numpy as np
import jax
import jax.numpy as jnp
from jax.experimental import pallas as pl
from jax.experimental.pallas import tpu as pltpu


_MXU_MIN_CONTRACT = 128  # below this contraction size, run the pointwise conv on the VPU


# ------------------------------------------------------------------ in-kernel helpers

def _depthwise(h, dw, k):
    """Valid depthwise conv along lanes: h (C, W) -> (C, W - k + 1). Static unroll over k."""
    w_out = h.shape[1] - (k - 1)
    acc = h[:, 0:w_out] * dw[:, 0:1]
    for j in range(1, k):
        acc = acc + h[:, j:j + w_out] * dw[:, j:j + 1]
    return acc


def _pointwise(wp, bp, acc):
    """Pointwise conv with folded BN/bias: (C_out, C_in) @ (C_in, W) + bias(C_out, 1)."""
    c_in = acc.shape[0]
    if c_in >= _MXU_MIN_CONTRACT:
        y = jnp.dot(wp, acc, preferred_element_type=jnp.float32)
    else:
        # Tiny contraction dim: C_in broadcast-FMAs on the VPU instead of an MXU push/pop.
        y = wp[:, 0:1] * acc[0:1, :]
        for c in range(1, c_in):
            y = y + wp[:, c:c + 1] * acc[c:c + 1, :]
    return y + bp


# ------------------------------------------------------------------ fused kernel

def _make_block_kernel(R, k):
    def kernel(*refs):
        # refs: x, (dw, Wp, bp) * R, Wres, bres, Ppad, out
        x_ref = refs[0]
        wres_ref, bres_ref, pool_ref = refs[1 + 3 * R:4 + 3 * R]
        o_ref = refs[4 + 3 * R]

        x = x_ref[0].astype(jnp.float32)                       # (C_in, L_pad_in)

        # ---- main path: R fused depthwise+pointwise+BN(+ReLU) stages, VMEM-resident ----
        h = x
        for s in range(R):
            dw = refs[1 + 3 * s][...].astype(jnp.float32)      # (C_s, k)
            wp = refs[2 + 3 * s][...].astype(jnp.float32)      # (C_out, C_s)  BN-folded
            bp = refs[3 + 3 * s][...].astype(jnp.float32)      # (C_out, 1)    folded bias
            y = _pointwise(wp, bp, _depthwise(h, dw, k))
            if s < R - 1:
                y = jnp.maximum(y, 0.0)                        # ReLU (Dropout1d: eval id)
            h = y                                              # width shrinks by (k-1)

        # ---- residual: pool FIRST (exact: pool columns sum to 1), then folded pointwise ----
        rp = jnp.dot(x, pool_ref[...].astype(jnp.float32),
                     preferred_element_type=jnp.float32)       # (C_in, LP)
        res = _pointwise(wres_ref[...].astype(jnp.float32),
                         bres_ref[...].astype(jnp.float32), rp)

        out = jnp.maximum(h + res, 0.0)                        # add + ReLU (+ eval Dropout)
        o_ref[0] = out.astype(o_ref.dtype)                     # lane-dense (C_out, LP) store

    return kernel


# ------------------------------------------------------------------ parameter setup

def fold_bn(gamma, beta, mean, var, eps=1e-5):
    scale = gamma / jnp.sqrt(var + eps)
    shift = beta - mean * scale
    return scale, shift


def init_dsconv_params(key, c_in, c_out, k):
    ks = jax.random.split(key, 8)
    dw_w = 0.1 * jax.random.normal(ks[0], (c_in, k), jnp.float32)     # depthwise weight
    dw_b = 0.1 * jax.random.normal(ks[1], (c_in,), jnp.float32)
    pw_w = 0.1 * jax.random.normal(ks[2], (c_out, c_in), jnp.float32)  # pointwise weight
    pw_b = 0.1 * jax.random.normal(ks[3], (c_out,), jnp.float32)
    gamma = 1.0 + 0.1 * jax.random.normal(ks[4], (c_out,), jnp.float32)
    beta = 0.1 * jax.random.normal(ks[5], (c_out,), jnp.float32)
    mean = 0.1 * jax.random.normal(ks[6], (c_out,), jnp.float32)
    var = 1.0 + 0.1 * jnp.abs(jax.random.normal(ks[7], (c_out,), jnp.float32))
    scale, shift = fold_bn(gamma, beta, mean, var)
    return dict(dw_w=dw_w, dw_b=dw_b, pw_w=pw_w, pw_b=pw_b, scale=scale, shift=shift)


def init_block_params(key, R, in_channels, out_channels, k):
    keys = jax.random.split(key, R + 2)
    params = {"sub_blocks": []}
    c_in = in_channels
    for i in range(R - 1):
        params["sub_blocks"].append(init_dsconv_params(keys[i], c_in, out_channels, k))
        c_in = out_channels
    params["last"] = init_dsconv_params(keys[R - 1], c_in, out_channels, k)
    ks = jax.random.split(keys[R], 8)
    pw_w = 0.1 * jax.random.normal(ks[0], (out_channels, in_channels), jnp.float32)
    pw_b = 0.1 * jax.random.normal(ks[1], (out_channels,), jnp.float32)
    gamma = 1.0 + 0.1 * jax.random.normal(ks[2], (out_channels,), jnp.float32)
    beta = 0.1 * jax.random.normal(ks[3], (out_channels,), jnp.float32)
    mean = 0.1 * jax.random.normal(ks[4], (out_channels,), jnp.float32)
    var = 1.0 + 0.1 * jnp.abs(jax.random.normal(ks[5], (out_channels,), jnp.float32))
    scale, shift = fold_bn(gamma, beta, mean, var)
    params["res"] = dict(pw_w=pw_w, pw_b=pw_b, scale=scale, shift=shift)
    return params


def adaptive_avg_pool_matrix(L_in, L_out, shape=None):
    """P[t, i] such that pooled = x @ P reproduces nn.AdaptiveAvgPool1d(L_out).
    If `shape` is given, zero-pad P to that (rows, cols) shape."""
    rows, cols = shape if shape is not None else (L_in, L_out)
    P = np.zeros((rows, cols), np.float32)
    for i in range(L_out):
        start = (i * L_in) // L_out
        end = -(-((i + 1) * L_in) // L_out)  # ceil
        P[start:end, i] = 1.0 / (end - start)
    return jnp.asarray(P)


# ------------------------------------------------------------------ Block forward (fused)

def block_forward(x, params, *, k, R):
    N, C_in, L = x.shape
    stages = list(params["sub_blocks"]) + [params["last"]]
    assert len(stages) == R
    C_out = stages[-1]["pw_w"].shape[0]
    L_out = L - R * (k - 1)
    LP = ((L_out + 127) // 128) * 128          # lane-dense output width
    L_pad_in = LP + R * (k - 1)                # >= L always (since LP >= L_out)

    # zero-pad the length axis; garbage lanes stay finite and are sliced off at the end
    x_pad = jnp.pad(x, ((0, 0), (0, 0), (0, L_pad_in - L)))

    inputs = [x_pad]
    in_specs = [pl.BlockSpec((1, C_in, L_pad_in), lambda n: (n, 0, 0))]

    def add_input(a):  # all weight-like inputs are 2-D and grid-invariant
        inputs.append(a)
        in_specs.append(pl.BlockSpec(a.shape, lambda n: (0, 0)))

    # Fold BN + pointwise bias + depthwise bias into the pointwise weights (exact algebra):
    #   W' = scale ⊙ pw_w ,  b' = scale * (pw_w @ dw_b + pw_b) + shift
    for p in stages:
        wp = p["scale"][:, None] * p["pw_w"]
        bp = (p["scale"] * (p["pw_w"] @ p["dw_b"] + p["pw_b"]) + p["shift"]).reshape(-1, 1)
        add_input(p["dw_w"])
        add_input(wp)
        add_input(bp)

    # Residual branch folding (pool commutes with per-channel affine since columns sum to 1).
    rp = params["res"]
    add_input(rp["scale"][:, None] * rp["pw_w"])
    add_input((rp["scale"] * rp["pw_b"] + rp["shift"]).reshape(-1, 1))
    # TODO(synk): at Jasper-scale L the dense (L_pad_in, LP) pool matrix should become a
    # segmented average (it is O(L^2) f32 and would pressure v7x's 64 MiB VMEM).
    add_input(adaptive_avg_pool_matrix(L, L_out, shape=(L_pad_in, LP)))

    out = pl.pallas_call(
        _make_block_kernel(R, k),
        out_shape=jax.ShapeDtypeStruct((N, C_out, LP), x.dtype),
        grid=(N,),
        in_specs=in_specs,
        out_specs=pl.BlockSpec((1, C_out, LP), lambda n: (n, 0, 0)),
        compiler_params=pltpu.CompilerParams(dimension_semantics=("parallel",)),
    )(*inputs)
    return out[:, :, :L_out]


# ------------------------------------------------------------------ pure-JAX reference
# (unfused / unfolded — mirrors the PyTorch module in eval mode)

def _ref_dsconv(x, p, k, relu):
    N, C, L = x.shape
    Lo = L - k + 1
    acc = sum(x[:, :, j:j + Lo] * p["dw_w"][:, j][None, :, None] for j in range(k))
    acc = acc + p["dw_b"][None, :, None]
    y = jnp.einsum("oc,ncl->nol", p["pw_w"], acc) + p["pw_b"][None, :, None]
    y = y * p["scale"][None, :, None] + p["shift"][None, :, None]
    return jnp.maximum(y, 0.0) if relu else y


def block_forward_ref(x, params, *, k, R):
    residual = x
    h = x
    for p in params["sub_blocks"]:
        h = _ref_dsconv(h, p, k, True)
    h = _ref_dsconv(h, params["last"], k, False)
    rp = params["res"]
    r = jnp.einsum("oc,ncl->nol", rp["pw_w"], residual) + rp["pw_b"][None, :, None]
    r = r * rp["scale"][None, :, None] + rp["shift"][None, :, None]
    P = adaptive_avg_pool_matrix(residual.shape[-1], h.shape[-1])
    r = jnp.einsum("ncl,lo->nco", r, P)
    return jnp.maximum(h + r, 0.0)


# ------------------------------------------------------------------ main

if __name__ == "__main__":
    R = 3
    in_channels = 4
    out_channels = 8
    kernel_size = 3
    N, L = 2, 32

    key = jax.random.PRNGKey(0)
    kx, kp = jax.random.split(key)
    x = jax.random.normal(kx, (N, in_channels, L), jnp.float32)
    params = init_block_params(kp, R, in_channels, out_channels, kernel_size)

    out = block_forward(x, params, k=kernel_size, R=R)
    out = jax.block_until_ready(out)

    ref = block_forward_ref(x, params, k=kernel_size, R=R)
    assert out.shape == (N, out_channels, L - R * (kernel_size - 1)), out.shape
    np.testing.assert_allclose(np.asarray(out), np.asarray(ref), rtol=1e-5, atol=1e-5)

    print("KERNEL_OK")
</pallas_src>

<mosaic_0001>
module attributes {stable_mosaic.version = 11 : i64} {
  func.func @kernel(%arg0: i32, %arg1: memref<1x4x134xf32, #tpu.memory_space<vmem>>, %arg2: memref<4x3xf32, #tpu.memory_space<vmem>>, %arg3: memref<8x4xf32, #tpu.memory_space<vmem>>, %arg4: memref<8x1xf32, #tpu.memory_space<vmem>>, %arg5: memref<8x3xf32, #tpu.memory_space<vmem>>, %arg6: memref<8x8xf32, #tpu.memory_space<vmem>>, %arg7: memref<8x1xf32, #tpu.memory_space<vmem>>, %arg8: memref<8x3xf32, #tpu.memory_space<vmem>>, %arg9: memref<8x8xf32, #tpu.memory_space<vmem>>, %arg10: memref<8x1xf32, #tpu.memory_space<vmem>>, %arg11: memref<8x4xf32, #tpu.memory_space<vmem>>, %arg12: memref<8x1xf32, #tpu.memory_space<vmem>>, %arg13: memref<134x128xf32, #tpu.memory_space<vmem>>, %arg14: memref<1x8x128xf32, #tpu.memory_space<vmem>>) attributes {dimension_semantics = [#tpu.dimension_semantics<parallel>], iteration_bounds = array<i64: 2>, scalar_prefetch = 0 : i64, scratch_operands = 0 : i64, tpu.core_type = #tpu.core_type<tc>, window_params = [{transform_indices = @transform_0, window_bounds = array<i64: 1, 4, 134>}, {pipeline_mode = #tpu.pipeline_mode<synchronous>, transform_indices = @transform_1, window_bounds = array<i64: 4, 3>}, {pipeline_mode = #tpu.pipeline_mode<synchronous>, transform_indices = @transform_2, window_bounds = array<i64: 8, 4>}, {pipeline_mode = #tpu.pipeline_mode<synchronous>, transform_indices = @transform_3, window_bounds = array<i64: 8, 1>}, {pipeline_mode = #tpu.pipeline_mode<synchronous>, transform_indices = @transform_4, window_bounds = array<i64: 8, 3>}, {pipeline_mode = #tpu.pipeline_mode<synchronous>, transform_indices = @transform_5, window_bounds = array<i64: 8, 8>}, {pipeline_mode = #tpu.pipeline_mode<synchronous>, transform_indices = @transform_6, window_bounds = array<i64: 8, 1>}, {pipeline_mode = #tpu.pipeline_mode<synchronous>, transform_indices = @transform_7, window_bounds = array<i64: 8, 3>}, {pipeline_mode = #tpu.pipeline_mode<synchronous>, transform_indices = @transform_8, window_bounds = array<i64: 8, 8>}, {pipeline_mode = #tpu.pipeline_mode<synchronous>, transform_indices = @transform_9, window_bounds = array<i64: 8, 1>}, {pipeline_mode = #tpu.pipeline_mode<synchronous>, transform_indices = @transform_10, window_bounds = array<i64: 8, 4>}, {pipeline_mode = #tpu.pipeline_mode<synchronous>, transform_indices = @transform_11, window_bounds = array<i64: 8, 1>}, {pipeline_mode = #tpu.pipeline_mode<synchronous>, transform_indices = @transform_12, window_bounds = array<i64: 134, 128>}, {transform_indices = @transform_13, window_bounds = array<i64: 1, 8, 128>}]} {
    %c0 = arith.constant 0 : index
    %c0_0 = arith.constant 0 : index
    %c0_1 = arith.constant 0 : index
    %0 = vector.load %arg1[%c0, %c0_0, %c0_1] : memref<1x4x134xf32, #tpu.memory_space<vmem>>, vector<1x4x134xf32>
    %1 = vector.shape_cast %0 : vector<1x4x134xf32> to vector<4x134xf32>
    %c0_2 = arith.constant 0 : index
    %c0_3 = arith.constant 0 : index
    %2 = vector.load %arg2[%c0_2, %c0_3] : memref<4x3xf32, #tpu.memory_space<vmem>>, vector<4x3xf32>
    %c0_4 = arith.constant 0 : index
    %c0_5 = arith.constant 0 : index
    %3 = vector.load %arg3[%c0_4, %c0_5] : memref<8x4xf32, #tpu.memory_space<vmem>>, vector<8x4xf32>
    %c0_6 = arith.constant 0 : index
    %c0_7 = arith.constant 0 : index
    %4 = vector.load %arg4[%c0_6, %c0_7] : memref<8x1xf32, #tpu.memory_space<vmem>>, vector<8x1xf32>
    %5 = vector.extract_strided_slice %1 {offsets = [0, 0], sizes = [4, 132], strides = [1, 1]} : vector<4x134xf32> to vector<4x132xf32>
    %6 = vector.extract_strided_slice %2 {offsets = [0, 0], sizes = [4, 1], strides = [1, 1]} : vector<4x3xf32> to vector<4x1xf32>
    %7 = vector.broadcast %6 : vector<4x1xf32> to vector<4x132xf32>
    %8 = arith.mulf %5, %7 : vector<4x132xf32>
    %9 = vector.extract_strided_slice %1 {offsets = [0, 1], sizes = [4, 132], strides = [1, 1]} : vector<4x134xf32> to vector<4x132xf32>
    %10 = vector.extract_strided_slice %2 {offsets = [0, 1], sizes = [4, 1], strides = [1, 1]} : vector<4x3xf32> to vector<4x1xf32>
    %11 = vector.broadcast %10 : vector<4x1xf32> to vector<4x132xf32>
    %12 = arith.mulf %9, %11 : vector<4x132xf32>
    %13 = arith.addf %8, %12 : vector<4x132xf32>
    %14 = vector.extract_strided_slice %1 {offsets = [0, 2], sizes = [4, 132], strides = [1, 1]} : vector<4x134xf32> to vector<4x132xf32>
    %15 = vector.extract_strided_slice %2 {offsets = [0, 2], sizes = [4, 1], strides = [1, 1]} : vector<4x3xf32> to vector<4x1xf32>
    %16 = vector.broadcast %15 : vector<4x1xf32> to vector<4x132xf32>
    %17 = arith.mulf %14, %16 : vector<4x132xf32>
    %18 = arith.addf %13, %17 : vector<4x132xf32>
    %19 = vector.extract_strided_slice %3 {offsets = [0, 0], sizes = [8, 1], strides = [1, 1]} : vector<8x4xf32> to vector<8x1xf32>
    %20 = vector.extract_strided_slice %18 {offsets = [0, 0], sizes = [1, 132], strides = [1, 1]} : vector<4x132xf32> to vector<1x132xf32>
    %21 = vector.broadcast %19 : vector<8x1xf32> to vector<8x132xf32>
    %22 = vector.broadcast %20 : vector<1x132xf32> to vector<8x132xf32>
    %23 = arith.mulf %21, %22 : vector<8x132xf32>
    %24 = vector.extract_strided_slice %3 {offsets = [0, 1], sizes = [8, 1], strides = [1, 1]} : vector<8x4xf32> to vector<8x1xf32>
    %25 = vector.extract_strided_slice %18 {offsets = [1, 0], sizes = [1, 132], strides = [1, 1]} : vector<4x132xf32> to vector<1x132xf32>
    %26 = vector.broadcast %24 : vector<8x1xf32> to vector<8x132xf32>
    %27 = vector.broadcast %25 : vector<1x132xf32> to vector<8x132xf32>
    %28 = arith.mulf %26, %27 : vector<8x132xf32>
    %29 = arith.addf %23, %28 : vector<8x132xf32>
    %30 = vector.extract_strided_slice %3 {offsets = [0, 2], sizes = [8, 1], strides = [1, 1]} : vector<8x4xf32> to vector<8x1xf32>
    %31 = vector.extract_strided_slice %18 {offsets = [2, 0], sizes = [1, 132], strides = [1, 1]} : vector<4x132xf32> to vector<1x132xf32>
    %32 = vector.broadcast %30 : vector<8x1xf32> to vector<8x132xf32>
    %33 = vector.broadcast %31 : vector<1x132xf32> to vector<8x132xf32>
    %34 = arith.mulf %32, %33 : vector<8x132xf32>
    %35 = arith.addf %29, %34 : vector<8x132xf32>
    %36 = vector.extract_strided_slice %3 {offsets = [0, 3], sizes = [8, 1], strides = [1, 1]} : vector<8x4xf32> to vector<8x1xf32>
    %37 = vector.extract_strided_slice %18 {offsets = [3, 0], sizes = [1, 132], strides = [1, 1]} : vector<4x132xf32> to vector<1x132xf32>
    %38 = vector.broadcast %36 : vector<8x1xf32> to vector<8x132xf32>
    %39 = vector.broadcast %37 : vector<1x132xf32> to vector<8x132xf32>
    %40 = arith.mulf %38, %39 : vector<8x132xf32>
    %41 = arith.addf %35, %40 : vector<8x132xf32>
    %42 = vector.broadcast %4 : vector<8x1xf32> to vector<8x132xf32>
    %43 = arith.addf %41, %42 : vector<8x132xf32>
    %cst = arith.constant 0.000000e+00 : f32
    %44 = vector.broadcast %cst : f32 to vector<8x132xf32>
    %45 = arith.maximumf %43, %44 : vector<8x132xf32>
    %c0_8 = arith.constant 0 : index
    %c0_9 = arith.constant 0 : index
    %46 = vector.load %arg5[%c0_8, %c0_9] : memref<8x3xf32, #tpu.memory_space<vmem>>, vector<8x3xf32>
    %c0_10 = arith.constant 0 : index
    %c0_11 = arith.constant 0 : index
    %47 = vector.load %arg6[%c0_10, %c0_11] : memref<8x8xf32, #tpu.memory_space<vmem>>, vector<8x8xf32>
    %c0_12 = arith.constant 0 : index
    %c0_13 = arith.constant 0 : index
    %48 = vector.load %arg7[%c0_12, %c0_13] : memref<8x1xf32, #tpu.memory_space<vmem>>, vector<8x1xf32>
    %49 = vector.extract_strided_slice %45 {offsets = [0, 0], sizes = [8, 130], strides = [1, 1]} : vector<8x132xf32> to vector<8x130xf32>
    %50 = vector.extract_strided_slice %46 {offsets = [0, 0], sizes = [8, 1], strides = [1, 1]} : vector<8x3xf32> to vector<8x1xf32>
    %51 = vector.broadcast %50 : vector<8x1xf32> to vector<8x130xf32>
    %52 = arith.mulf %49, %51 : vector<8x130xf32>
    %53 = vector.extract_strided_slice %45 {offsets = [0, 1], sizes = [8, 130], strides = [1, 1]} : vector<8x132xf32> to vector<8x130xf32>
    %54 = vector.extract_strided_slice %46 {offsets = [0, 1], sizes = [8, 1], strides = [1, 1]} : vector<8x3xf32> to vector<8x1xf32>
    %55 = vector.broadcast %54 : vector<8x1xf32> to vector<8x130xf32>
    %56 = arith.mulf %53, %55 : vector<8x130xf32>
    %57 = arith.addf %52, %56 : vector<8x130xf32>
    %58 = vector.extract_strided_slice %45 {offsets = [0, 2], sizes = [8, 130], strides = [1, 1]} : vector<8x132xf32> to vector<8x130xf32>
    %59 = vector.extract_strided_slice %46 {offsets = [0, 2], sizes = [8, 1], strides = [1, 1]} : vector<8x3xf32> to vector<8x1xf32>
    %60 = vector.broadcast %59 : vector<8x1xf32> to vector<8x130xf32>
    %61 = arith.mulf %58, %60 : vector<8x130xf32>
    %62 = arith.addf %57, %61 : vector<8x130xf32>
    %63 = vector.extract_strided_slice %47 {offsets = [0, 0], sizes = [8, 1], strides = [1, 1]} : vector<8x8xf32> to vector<8x1xf32>
    %64 = vector.extract_strided_slice %62 {offsets = [0, 0], sizes = [1, 130], strides = [1, 1]} : vector<8x130xf32> to vector<1x130xf32>
    %65 = vector.broadcast %63 : vector<8x1xf32> to vector<8x130xf32>
    %66 = vector.broadcast %64 : vector<1x130xf32> to vector<8x130xf32>
    %67 = arith.mulf %65, %66 : vector<8x130xf32>
    %68 = vector.extract_strided_slice %47 {offsets = [0, 1], sizes = [8, 1], strides = [1, 1]} : vector<8x8xf32> to vector<8x1xf32>
    %69 = vector.extract_strided_slice %62 {offsets = [1, 0], sizes = [1, 130], strides = [1, 1]} : vector<8x130xf32> to vector<1x130xf32>
    %70 = vector.broadcast %68 : vector<8x1xf32> to vector<8x130xf32>
    %71 = vector.broadcast %69 : vector<1x130xf32> to vector<8x130xf32>
    %72 = arith.mulf %70, %71 : vector<8x130xf32>
    %73 = arith.addf %67, %72 : vector<8x130xf32>
    %74 = vector.extract_strided_slice %47 {offsets = [0, 2], sizes = [8, 1], strides = [1, 1]} : vector<8x8xf32> to vector<8x1xf32>
    %75 = vector.extract_strided_slice %62 {offsets = [2, 0], sizes = [1, 130], strides = [1, 1]} : vector<8x130xf32> to vector<1x130xf32>
    %76 = vector.broadcast %74 : vector<8x1xf32> to vector<8x130xf32>
    %77 = vector.broadcast %75 : vector<1x130xf32> to vector<8x130xf32>
    %78 = arith.mulf %76, %77 : vector<8x130xf32>
    %79 = arith.addf %73, %78 : vector<8x130xf32>
    %80 = vector.extract_strided_slice %47 {offsets = [0, 3], sizes = [8, 1], strides = [1, 1]} : vector<8x8xf32> to vector<8x1xf32>
    %81 = vector.extract_strided_slice %62 {offsets = [3, 0], sizes = [1, 130], strides = [1, 1]} : vector<8x130xf32> to vector<1x130xf32>
    %82 = vector.broadcast %80 : vector<8x1xf32> to vector<8x130xf32>
    %83 = vector.broadcast %81 : vector<1x130xf32> to vector<8x130xf32>
    %84 = arith.mulf %82, %83 : vector<8x130xf32>
    %85 = arith.addf %79, %84 : vector<8x130xf32>
    %86 = vector.extract_strided_slice %47 {offsets = [0, 4], sizes = [8, 1], strides = [1, 1]} : vector<8x8xf32> to vector<8x1xf32>
    %87 = vector.extract_strided_slice %62 {offsets = [4, 0], sizes = [1, 130], strides = [1, 1]} : vector<8x130xf32> to vector<1x130xf32>
    %88 = vector.broadcast %86 : vector<8x1xf32> to vector<8x130xf32>
    %89 = vector.broadcast %87 : vector<1x130xf32> to vector<8x130xf32>
    %90 = arith.mulf %88, %89 : vector<8x130xf32>
    %91 = arith.addf %85, %90 : vector<8x130xf32>
    %92 = vector.extract_strided_slice %47 {offsets = [0, 5], sizes = [8, 1], strides = [1, 1]} : vector<8x8xf32> to vector<8x1xf32>
    %93 = vector.extract_strided_slice %62 {offsets = [5, 0], sizes = [1, 130], strides = [1, 1]} : vector<8x130xf32> to vector<1x130xf32>
    %94 = vector.broadcast %92 : vector<8x1xf32> to vector<8x130xf32>
    %95 = vector.broadcast %93 : vector<1x130xf32> to vector<8x130xf32>
    %96 = arith.mulf %94, %95 : vector<8x130xf32>
    %97 = arith.addf %91, %96 : vector<8x130xf32>
    %98 = vector.extract_strided_slice %47 {offsets = [0, 6], sizes = [8, 1], strides = [1, 1]} : vector<8x8xf32> to vector<8x1xf32>
    %99 = vector.extract_strided_slice %62 {offsets = [6, 0], sizes = [1, 130], strides = [1, 1]} : vector<8x130xf32> to vector<1x130xf32>
    %100 = vector.broadcast %98 : vector<8x1xf32> to vector<8x130xf32>
    %101 = vector.broadcast %99 : vector<1x130xf32> to vector<8x130xf32>
    %102 = arith.mulf %100, %101 : vector<8x130xf32>
    %103 = arith.addf %97, %102 : vector<8x130xf32>
    %104 = vector.extract_strided_slice %47 {offsets = [0, 7], sizes = [8, 1], strides = [1, 1]} : vector<8x8xf32> to vector<8x1xf32>
    %105 = vector.extract_strided_slice %62 {offsets = [7, 0], sizes = [1, 130], strides = [1, 1]} : vector<8x130xf32> to vector<1x130xf32>
    %106 = vector.broadcast %104 : vector<8x1xf32> to vector<8x130xf32>
    %107 = vector.broadcast %105 : vector<1x130xf32> to vector<8x130xf32>
    %108 = arith.mulf %106, %107 : vector<8x130xf32>
    %109 = arith.addf %103, %108 : vector<8x130xf32>
    %110 = vector.broadcast %48 : vector<8x1xf32> to vector<8x130xf32>
    %111 = arith.addf %109, %110 : vector<8x130xf32>
    %cst_14 = arith.constant 0.000000e+00 : f32
    %112 = vector.broadcast %cst_14 : f32 to vector<8x130xf32>
    %113 = arith.maximumf %111, %112 : vector<8x130xf32>
    %c0_15 = arith.constant 0 : index
    %c0_16 = arith.constant 0 : index
    %114 = vector.load %arg8[%c0_15, %c0_16] : memref<8x3xf32, #tpu.memory_space<vmem>>, vector<8x3xf32>
    %c0_17 = arith.constant 0 : index
    %c0_18 = arith.constant 0 : index
    %115 = vector.load %arg9[%c0_17, %c0_18] : memref<8x8xf32, #tpu.memory_space<vmem>>, vector<8x8xf32>
    %c0_19 = arith.constant 0 : index
    %c0_20 = arith.constant 0 : index
    %116 = vector.load %arg10[%c0_19, %c0_20] : memref<8x1xf32, #tpu.memory_space<vmem>>, vector<8x1xf32>
    %117 = vector.extract_strided_slice %113 {offsets = [0, 0], sizes = [8, 128], strides = [1, 1]} : vector<8x130xf32> to vector<8x128xf32>
    %118 = vector.extract_strided_slice %114 {offsets = [0, 0], sizes = [8, 1], strides = [1, 1]} : vector<8x3xf32> to vector<8x1xf32>
    %119 = vector.broadcast %118 : vector<8x1xf32> to vector<8x128xf32>
    %120 = arith.mulf %117, %119 : vector<8x128xf32>
    %121 = vector.extract_strided_slice %113 {offsets = [0, 1], sizes = [8, 128], strides = [1, 1]} : vector<8x130xf32> to vector<8x128xf32>
    %122 = vector.extract_strided_slice %114 {offsets = [0, 1], sizes = [8, 1], strides = [1, 1]} : vector<8x3xf32> to vector<8x1xf32>
    %123 = vector.broadcast %122 : vector<8x1xf32> to vector<8x128xf32>
    %124 = arith.mulf %121, %123 : vector<8x128xf32>
    %125 = arith.addf %120, %124 : vector<8x128xf32>
    %126 = vector.extract_strided_slice %113 {offsets = [0, 2], sizes = [8, 128], strides = [1, 1]} : vector<8x130xf32> to vector<8x128xf32>
    %127 = vector.extract_strided_slice %114 {offsets = [0, 2], sizes = [8, 1], strides = [1, 1]} : vector<8x3xf32> to vector<8x1xf32>
    %128 = vector.broadcast %127 : vector<8x1xf32> to vector<8x128xf32>
    %129 = arith.mulf %126, %128 : vector<8x128xf32>
    %130 = arith.addf %125, %129 : vector<8x128xf32>
    %131 = vector.extract_strided_slice %115 {offsets = [0, 0], sizes = [8, 1], strides = [1, 1]} : vector<8x8xf32> to vector<8x1xf32>
    %132 = vector.extract_strided_slice %130 {offsets = [0, 0], sizes = [1, 128], strides = [1, 1]} : vector<8x128xf32> to vector<1x128xf32>
    %133 = vector.broadcast %131 : vector<8x1xf32> to vector<8x128xf32>
    %134 = vector.broadcast %132 : vector<1x128xf32> to vector<8x128xf32>
    %135 = arith.mulf %133, %134 : vector<8x128xf32>
    %136 = vector.extract_strided_slice %115 {offsets = [0, 1], sizes = [8, 1], strides = [1, 1]} : vector<8x8xf32> to vector<8x1xf32>
    %137 = vector.extract_strided_slice %130 {offsets = [1, 0], sizes = [1, 128], strides = [1, 1]} : vector<8x128xf32> to vector<1x128xf32>
    %138 = vector.broadcast %136 : vector<8x1xf32> to vector<8x128xf32>
    %139 = vector.broadcast %137 : vector<1x128xf32> to vector<8x128xf32>
    %140 = arith.mulf %138, %139 : vector<8x128xf32>
    %141 = arith.addf %135, %140 : vector<8x128xf32>
    %142 = vector.extract_strided_slice %115 {offsets = [0, 2], sizes = [8, 1], strides = [1, 1]} : vector<8x8xf32> to vector<8x1xf32>
    %143 = vector.extract_strided_slice %130 {offsets = [2, 0], sizes = [1, 128], strides = [1, 1]} : vector<8x128xf32> to vector<1x128xf32>
    %144 = vector.broadcast %142 : vector<8x1xf32> to vector<8x128xf32>
    %145 = vector.broadcast %143 : vector<1x128xf32> to vector<8x128xf32>
    %146 = arith.mulf %144, %145 : vector<8x128xf32>
    %147 = arith.addf %141, %146 : vector<8x128xf32>
    %148 = vector.extract_strided_slice %115 {offsets = [0, 3], sizes = [8, 1], strides = [1, 1]} : vector<8x8xf32> to vector<8x1xf32>
    %149 = vector.extract_strided_slice %130 {offsets = [3, 0], sizes = [1, 128], strides = [1, 1]} : vector<8x128xf32> to vector<1x128xf32>
    %150 = vector.broadcast %148 : vector<8x1xf32> to vector<8x128xf32>
    %151 = vector.broadcast %149 : vector<1x128xf32> to vector<8x128xf32>
    %152 = arith.mulf %150, %151 : vector<8x128xf32>
    %153 = arith.addf %147, %152 : vector<8x128xf32>
    %154 = vector.extract_strided_slice %115 {offsets = [0, 4], sizes = [8, 1], strides = [1, 1]} : vector<8x8xf32> to vector<8x1xf32>
    %155 = vector.extract_strided_slice %130 {offsets = [4, 0], sizes = [1, 128], strides = [1, 1]} : vector<8x128xf32> to vector<1x128xf32>
    %156 = vector.broadcast %154 : vector<8x1xf32> to vector<8x128xf32>
    %157 = vector.broadcast %155 : vector<1x128xf32> to vector<8x128xf32>
    %158 = arith.mulf %156, %157 : vector<8x128xf32>
    %159 = arith.addf %153, %158 : vector<8x128xf32>
    %160 = vector.extract_strided_slice %115 {offsets = [0, 5], sizes = [8, 1], strides = [1, 1]} : vector<8x8xf32> to vector<8x1xf32>
    %161 = vector.extract_strided_slice %130 {offsets = [5, 0], sizes = [1, 128], strides = [1, 1]} : vector<8x128xf32> to vector<1x128xf32>
    %162 = vector.broadcast %160 : vector<8x1xf32> to vector<8x128xf32>
    %163 = vector.broadcast %161 : vector<1x128xf32> to vector<8x128xf32>
    %164 = arith.mulf %162, %163 : vector<8x128xf32>
    %165 = arith.addf %159, %164 : vector<8x128xf32>
    %166 = vector.extract_strided_slice %115 {offsets = [0, 6], sizes = [8, 1], strides = [1, 1]} : vector<8x8xf32> to vector<8x1xf32>
    %167 = vector.extract_strided_slice %130 {offsets = [6, 0], sizes = [1, 128], strides = [1, 1]} : vector<8x128xf32> to vector<1x128xf32>
    %168 = vector.broadcast %166 : vector<8x1xf32> to vector<8x128xf32>
    %169 = vector.broadcast %167 : vector<1x128xf32> to vector<8x128xf32>
    %170 = arith.mulf %168, %169 : vector<8x128xf32>
    %171 = arith.addf %165, %170 : vector<8x128xf32>
    %172 = vector.extract_strided_slice %115 {offsets = [0, 7], sizes = [8, 1], strides = [1, 1]} : vector<8x8xf32> to vector<8x1xf32>
    %173 = vector.extract_strided_slice %130 {offsets = [7, 0], sizes = [1, 128], strides = [1, 1]} : vector<8x128xf32> to vector<1x128xf32>
    %174 = vector.broadcast %172 : vector<8x1xf32> to vector<8x128xf32>
    %175 = vector.broadcast %173 : vector<1x128xf32> to vector<8x128xf32>
    %176 = arith.mulf %174, %175 : vector<8x128xf32>
    %177 = arith.addf %171, %176 : vector<8x128xf32>
    %178 = vector.broadcast %116 : vector<8x1xf32> to vector<8x128xf32>
    %179 = arith.addf %177, %178 : vector<8x128xf32>
    %c0_21 = arith.constant 0 : index
    %c0_22 = arith.constant 0 : index
    %180 = vector.load %arg13[%c0_21, %c0_22] : memref<134x128xf32, #tpu.memory_space<vmem>>, vector<134x128xf32>
    %cst_23 = arith.constant dense<0.000000e+00> : vector<4x128xf32>
    %181 = tpu.matmul %1, %180, %cst_23 {dimension_numbers = #tpu.dot_dimension_numbers<[1], [0], [0], [1], [0, 0, 1, 1], [], []>} : vector<4x134xf32>, vector<134x128xf32>, vector<4x128xf32> -> vector<4x128xf32>
    %c0_24 = arith.constant 0 : index
    %c0_25 = arith.constant 0 : index
    %182 = vector.load %arg11[%c0_24, %c0_25] : memref<8x4xf32, #tpu.memory_space<vmem>>, vector<8x4xf32>
    %c0_26 = arith.constant 0 : index
    %c0_27 = arith.constant 0 : index
    %183 = vector.load %arg12[%c0_26, %c0_27] : memref<8x1xf32, #tpu.memory_space<vmem>>, vector<8x1xf32>
    %184 = vector.extract_strided_slice %182 {offsets = [0, 0], sizes = [8, 1], strides = [1, 1]} : vector<8x4xf32> to vector<8x1xf32>
    %185 = vector.extract_strided_slice %181 {offsets = [0, 0], sizes = [1, 128], strides = [1, 1]} : vector<4x128xf32> to vector<1x128xf32>
    %186 = vector.broadcast %184 : vector<8x1xf32> to vector<8x128xf32>
    %187 = vector.broadcast %185 : vector<1x128xf32> to vector<8x128xf32>
    %188 = arith.mulf %186, %187 : vector<8x128xf32>
    %189 = vector.extract_strided_slice %182 {offsets = [0, 1], sizes = [8, 1], strides = [1, 1]} : vector<8x4xf32> to vector<8x1xf32>
    %190 = vector.extract_strided_slice %181 {offsets = [1, 0], sizes = [1, 128], strides = [1, 1]} : vector<4x128xf32> to vector<1x128xf32>
    %191 = vector.broadcast %189 : vector<8x1xf32> to vector<8x128xf32>
    %192 = vector.broadcast %190 : vector<1x128xf32> to vector<8x128xf32>
    %193 = arith.mulf %191, %192 : vector<8x128xf32>
    %194 = arith.addf %188, %193 : vector<8x128xf32>
    %195 = vector.extract_strided_slice %182 {offsets = [0, 2], sizes = [8, 1], strides = [1, 1]} : vector<8x4xf32> to vector<8x1xf32>
    %196 = vector.extract_strided_slice %181 {offsets = [2, 0], sizes = [1, 128], strides = [1, 1]} : vector<4x128xf32> to vector<1x128xf32>
    %197 = vector.broadcast %195 : vector<8x1xf32> to vector<8x128xf32>
    %198 = vector.broadcast %196 : vector<1x128xf32> to vector<8x128xf32>
    %199 = arith.mulf %197, %198 : vector<8x128xf32>
    %200 = arith.addf %194, %199 : vector<8x128xf32>
    %201 = vector.extract_strided_slice %182 {offsets = [0, 3], sizes = [8, 1], strides = [1, 1]} : vector<8x4xf32> to vector<8x1xf32>
    %202 = vector.extract_strided_slice %181 {offsets = [3, 0], sizes = [1, 128], strides = [1, 1]} : vector<4x128xf32> to vector<1x128xf32>
    %203 = vector.broadcast %201 : vector<8x1xf32> to vector<8x128xf32>
    %204 = vector.broadcast %202 : vector<1x128xf32> to vector<8x128xf32>
    %205 = arith.mulf %203, %204 : vector<8x128xf32>
    %206 = arith.addf %200, %205 : vector<8x128xf32>
    %207 = vector.broadcast %183 : vector<8x1xf32> to vector<8x128xf32>
    %208 = arith.addf %206, %207 : vector<8x128xf32>
    %209 = arith.addf %179, %208 : vector<8x128xf32>
    %cst_28 = arith.constant 0.000000e+00 : f32
    %210 = vector.broadcast %cst_28 : f32 to vector<8x128xf32>
    %211 = arith.maximumf %209, %210 : vector<8x128xf32>
    %c0_29 = arith.constant 0 : index
    %c0_30 = arith.constant 0 : index
    %c0_31 = arith.constant 0 : index
    %212 = vector.load %arg14[%c0_29, %c0_30, %c0_31] : memref<1x8x128xf32, #tpu.memory_space<vmem>>, vector<1x8x128xf32>
    %213 = vector.shape_cast %212 : vector<1x8x128xf32> to vector<8x128xf32>
    %214 = vector.shape_cast %211 : vector<8x128xf32> to vector<1x8x128xf32>
    tpu.vector_store %arg14[%c0_29, %c0_30, %c0_31], %214 {strides = array<i32>} : memref<1x8x128xf32, #tpu.memory_space<vmem>>, vector<1x8x128xf32>,
    return
  }
  func.func @transform_0(%arg0: i32) -> (i32, i32, i32) {
    %c0_i32 = arith.constant 0 : i32
    %c0_i32_0 = arith.constant 0 : i32
    %c0_i32_1 = arith.constant 0 : i32
    return %arg0, %c0_i32, %c0_i32_0 : i32, i32, i32
  }
  func.func @transform_1(%arg0: i32) -> (i32, i32) {
    %c0_i32 = arith.constant 0 : i32
    %c0_i32_0 = arith.constant 0 : i32
    %c0_i32_1 = arith.constant 0 : i32
    return %c0_i32, %c0_i32_0 : i32, i32
  }
  func.func @transform_2(%arg0: i32) -> (i32, i32) {
    %c0_i32 = arith.constant 0 : i32
    %c0_i32_0 = arith.constant 0 : i32
    %c0_i32_1 = arith.constant 0 : i32
    return %c0_i32, %c0_i32_0 : i32, i32
  }
  func.func @transform_3(%arg0: i32) -> (i32, i32) {
    %c0_i32 = arith.constant 0 : i32
    %c0_i32_0 = arith.constant 0 : i32
    %c0_i32_1 = arith.constant 0 : i32
    return %c0_i32, %c0_i32_0 : i32, i32
  }
  func.func @transform_4(%arg0: i32) -> (i32, i32) {
    %c0_i32 = arith.constant 0 : i32
    %c0_i32_0 = arith.constant 0 : i32
    %c0_i32_1 = arith.constant 0 : i32
    return %c0_i32, %c0_i32_0 : i32, i32
  }
  func.func @transform_5(%arg0: i32) -> (i32, i32) {
    %c0_i32 = arith.constant 0 : i32
    %c0_i32_0 = arith.constant 0 : i32
    %c0_i32_1 = arith.constant 0 : i32
    return %c0_i32, %c0_i32_0 : i32, i32
  }
  func.func @transform_6(%arg0: i32) -> (i32, i32) {
    %c0_i32 = arith.constant 0 : i32
    %c0_i32_0 = arith.constant 0 : i32
    %c0_i32_1 = arith.constant 0 : i32
    return %c0_i32, %c0_i32_0 : i32, i32
  }
  func.func @transform_7(%arg0: i32) -> (i32, i32) {
    %c0_i32 = arith.constant 0 : i32
    %c0_i32_0 = arith.constant 0 : i32
    %c0_i32_1 = arith.constant 0 : i32
    return %c0_i32, %c0_i32_0 : i32, i32
  }
  func.func @transform_8(%arg0: i32) -> (i32, i32) {
    %c0_i32 = arith.constant 0 : i32
    %c0_i32_0 = arith.constant 0 : i32
    %c0_i32_1 = arith.constant 0 : i32
    return %c0_i32, %c0_i32_0 : i32, i32
  }
  func.func @transform_9(%arg0: i32) -> (i32, i32) {
    %c0_i32 = arith.constant 0 : i32
    %c0_i32_0 = arith.constant 0 : i32
    %c0_i32_1 = arith.constant 0 : i32
    return %c0_i32, %c0_i32_0 : i32, i32
  }
  func.func @transform_10(%arg0: i32) -> (i32, i32) {
    %c0_i32 = arith.constant 0 : i32
    %c0_i32_0 = arith.constant 0 : i32
    %c0_i32_1 = arith.constant 0 : i32
    return %c0_i32, %c0_i32_0 : i32, i32
  }
  func.func @transform_11(%arg0: i32) -> (i32, i32) {
    %c0_i32 = arith.constant 0 : i32
    %c0_i32_0 = arith.constant 0 : i32
    %c0_i32_1 = arith.constant 0 : i32
    return %c0_i32, %c0_i32_0 : i32, i32
  }
  func.func @transform_12(%arg0: i32) -> (i32, i32) {
    %c0_i32 = arith.constant 0 : i32
    %c0_i32_0 = arith.constant 0 : i32
    %c0_i32_1 = arith.constant 0 : i32
    return %c0_i32, %c0_i32_0 : i32, i32
  }
  func.func @transform_13(%arg0: i32) -> (i32, i32, i32) {
    %c0_i32 = arith.constant 0 : i32
    %c0_i32_0 = arith.constant 0 : i32
    %c0_i32_1 = arith.constant 0 : i32
    return %arg0, %c0_i32, %c0_i32_0 : i32, i32, i32
  }
}

</mosaic_0001>

<llo_original>
// kernel: tpu_custom_call.1
$region0: #{tpu_custom_call.1}
  #allocation0 [shape = 'u32[]', space=smem, size = 0x4, offset = 0x4, fixed_abs, tag = 'smem constant byte address 0x4 - core index']
  #allocation1 [shape = 'u32[72,128]{1,0:T(1,128)}', space=vmem, size = 0x9000, scoped, tag = 'internal scratch']
  %s0 = inlined_call_operand.vmem [shape: f32[2,4,134], index: 0, kind: input, shape index: {}]
  %s1 = inlined_call_operand.vmem [shape: f32[4,3], index: 1, kind: input, shape index: {}]
  %s2 = inlined_call_operand.vmem [shape: f32[8,4], index: 2, kind: input, shape index: {}]
  %s3 = inlined_call_operand.vmem [shape: f32[8,1], index: 3, kind: input, shape index: {}]
  %s4 = inlined_call_operand.vmem [shape: f32[8,3], index: 4, kind: input, shape index: {}]
  %s5 = inlined_call_operand.vmem [shape: f32[8,8], index: 5, kind: input, shape index: {}]
  %s6 = inlined_call_operand.vmem [shape: f32[8,1], index: 6, kind: input, shape index: {}]
  %s7 = inlined_call_operand.vmem [shape: f32[8,3], index: 7, kind: input, shape index: {}]
  %s8 = inlined_call_operand.vmem [shape: f32[8,8], index: 8, kind: input, shape index: {}]
  %s9 = inlined_call_operand.vmem [shape: f32[8,1], index: 9, kind: input, shape index: {}]
  %s10 = inlined_call_operand.vmem [shape: f32[8,4], index: 10, kind: input, shape index: {}]
  %s11 = inlined_call_operand.vmem [shape: f32[8,1], index: 11, kind: input, shape index: {}]
  %s12 = inlined_call_operand.hbm [shape: f32[134,128], index: 12, kind: input, shape index: {}]
  %s13 = inlined_call_operand.hbm [shape: f32[2,8,128], index: 13, kind: output, shape index: {}]
  %s14 = sld [smem:[#allocation0]]
  $region89: #{tpu_custom_call.1} parent=0
    _
  %s16 = ssub.s32 1, %s14
  %s17 = scalar_select 0, %s16, %s14
  $region1: #{tpu_custom_call.1} parent=0
    #allocation2 [shape = 'u8[69632]{0}', space=vmem, size = 0x11000, scoped, tag = 'input window, operand 12, single buffered']
    #allocation3 [shape = 's32[2]{0}', space=sflag, size = 0x8, scoped, tag = 'scoped memory for tpu_custom_call.1']
    #allocation4 [shape = 's32[2]{0}', space=sflag, size = 0x8, scoped, tag = 'scoped memory for tpu_custom_call.1']
    #allocation5 [shape = 'u8[8192]{0}', space=vmem, size = 0x2000, scoped, tag = 'output window, operand 0']
    %18 = vsyncpa [#allocation3], 0
    %19 = vsyncpa [#allocation4], 0
    %s20 = scalar_lea.sflag [#allocation4], 1
    %21 = vsyncpa %s20, 0
    loop: start=0, step=1, limit=4
    $region2: #{tpu_custom_call.1} parent=1 // loop_pre_header
      _
    $region3: #{tpu_custom_call.1} parent=1 // loop_header
      %s23 = sphi 0, %s27
      %p24 = scmp.ge.s32.totalorder %s23, 4
      %s33 = sphi 0, %s35
      %s36 = sphi 0, %s33
      %s37 = sphi 0, %s36
      %s53 = sphi 0, %s37
      %s57 = sphi 0, %s57
      %s59 = sphi 0, %s57
      %s60 = sphi 0, %s59
      %s74 = sphi 0, %s60
      %s78 = sphi 0, %s78
      %s80 = sphi 0, %s78
      %s81 = sphi 0, %s80
      %s95 = sphi 0, %s81
      %s99 = sphi 0, %s99
      %s101 = sphi 0, %s99
      %s102 = sphi 0, %s101
      %s116 = sphi 0, %s102
      %s120 = sphi 0, %s120
      %s122 = sphi 0, %s120
      %s123 = sphi 0, %s122
      %s137 = sphi 0, %s123
      %s141 = sphi 0, %s141
      %s143 = sphi 0, %s141
      %s144 = sphi 0, %s143
      %s158 = sphi 0, %s144
      %s162 = sphi 0, %s162
      %s164 = sphi 0, %s162
      %s165 = sphi 0, %s164
      %s179 = sphi 0, %s165
      %s183 = sphi 0, %s183
      %s185 = sphi 0, %s183
      %s186 = sphi 0, %s185
      %s200 = sphi 0, %s186
      %s204 = sphi 0, %s204
      %s206 = sphi 0, %s204
      %s207 = sphi 0, %s206
      %s221 = sphi 0, %s207
      %s225 = sphi 0, %s225
      %s227 = sphi 0, %s225
      %s228 = sphi 0, %s227
      %s242 = sphi 0, %s228
      %s246 = sphi 0, %s246
      %s248 = sphi 0, %s246
      %s249 = sphi 0, %s248
      %s263 = sphi 0, %s249
      %s267 = sphi 0, %s267
      %s269 = sphi 0, %s267
      %s270 = sphi 0, %s269
      %s284 = sphi 0, %s270
      %s288 = sphi 0, %s288
      %s290 = sphi 0, %s288
      %s291 = sphi 0, %s290
      %s305 = sphi 0, %s291
      %s311 = sphi 0, %s313
      %s314 = sphi 0, %s311
      %s315 = sphi 0, %s314
      %s331 = sphi 0, %s315
    $region4: #{tpu_custom_call.1} parent=1 // loop_header_branch
      %26 = sbr.rel (%p24) target = $region8
    $region5: #{tpu_custom_call.1} parent=1 // loop_body
      %s28 = ssub.s32 %s23, 1
      %s29 = ssub.s32 %s23, 2
      %s30 = sadd.s32 %s23, 1
      %s31 = ssub.s32 %s23, %s30
      %p32 = scmp.eq.s32.totalorder %s31, 0
      %s34 = sadd.s32 %s33, 1
      %s35 = scalar_select %p32, %s33, %s34
      %p38 = pneg %p32
      %p39 = scmp.eq.s32.totalorder %s23, 1
      %p40 = por %p38, %p39
      %p41 = scmp.ne.s32.totalorder %s33, %s36
      %p42 = scmp.eq.s32.totalorder %s23, 0
      %p43 = por %p41, %p42
      %p44 = scmp.ne.s32.totalorder %s33, %s36
      %p45 = scmp.eq.s32.totalorder %s28, 1
      %p46 = por %p44, %p45
      %p47 = scmp.ne.s32.totalorder %s36, %s37
      %p48 = scmp.eq.s32.totalorder %s28, 0
      %p49 = por %p47, %p48
      %p50 = scmp.ne.s32.totalorder %s36, %s37
      %p51 = scmp.eq.s32.totalorder %s29, 1
      %p52 = por %p50, %p51
      %p54 = scmp.ne.s32.totalorder %s37, %s53
      %p55 = scmp.eq.s32.totalorder %s29, 0
      %p56 = por %p54, %p55
      %s58 = sadd.s32 %s57, 1
      %p61 = scmp.eq.s32.totalorder %s23, 1
      %p62 = scmp.ne.s32.totalorder %s57, %s59
      %p63 = scmp.eq.s32.totalorder %s23, 0
      %p64 = por %p62, %p63
      %p65 = scmp.ne.s32.totalorder %s57, %s59
      %p66 = scmp.eq.s32.totalorder %s28, 1
      %p67 = por %p65, %p66
      %p68 = scmp.ne.s32.totalorder %s59, %s60
      %p69 = scmp.eq.s32.totalorder %s28, 0
      %p70 = por %p68, %p69
      %p71 = scmp.ne.s32.totalorder %s59, %s60
      %p72 = scmp.eq.s32.totalorder %s29, 1
      %p73 = por %p71, %p72
      %p75 = scmp.ne.s32.totalorder %s60, %s74
      %p76 = scmp.eq.s32.totalorder %s29, 0
      %p77 = por %p75, %p76
      %s79 = sadd.s32 %s78, 1
      %p82 = scmp.eq.s32.totalorder %s23, 1
      %p83 = scmp.ne.s32.totalorder %s78, %s80
      %p84 = scmp.eq.s32.totalorder %s23, 0
      %p85 = por %p83, %p84
      %p86 = scmp.ne.s32.totalorder %s78, %s80
      %p87 = scmp.eq.s32.totalorder %s28, 1
      %p88 = por %p86, %p87
      %p89 = scmp.ne.s32.totalorder %s80, %s81
      %p90 = scmp.eq.s32.totalorder %s28, 0
      %p91 = por %p89, %p90
      %p92 = scmp.ne.s32.totalorder %s80, %s81
      %p93 = scmp.eq.s32.totalorder %s29, 1
      %p94 = por %p92, %p93
      %p96 = scmp.ne.s32.totalorder %s81, %s95
      %p97 = scmp.eq.s32.totalorder %s29, 0
      %p98 = por %p96, %p97
      %s100 = sadd.s32 %s99, 1
      %p103 = scmp.eq.s32.totalorder %s23, 1
      %p104 = scmp.ne.s32.totalorder %s99, %s101
      %p105 = scmp.eq.s32.totalorder %s23, 0
      %p106 = por %p104, %p105
      %p107 = scmp.ne.s32.totalorder %s99, %s101
      %p108 = scmp.eq.s32.totalorder %s28, 1
      %p109 = por %p107, %p108
      %p110 = scmp.ne.s32.totalorder %s101, %s102
      %p111 = scmp.eq.s32.totalorder %s28, 0
      %p112 = por %p110, %p111
      %p113 = scmp.ne.s32.totalorder %s101, %s102
      %p114 = scmp.eq.s32.totalorder %s29, 1
      %p115 = por %p113, %p114
      %p117 = scmp.ne.s32.totalorder %s102, %s116
      %p118 = scmp.eq.s32.totalorder %s29, 0
      %p119 = por %p117, %p118
      %s121 = sadd.s32 %s120, 1
      %p124 = scmp.eq.s32.totalorder %s23, 1
      %p125 = scmp.ne.s32.totalorder %s120, %s122
      %p126 = scmp.eq.s32.totalorder %s23, 0
      %p127 = por %p125, %p126
      %p128 = scmp.ne.s32.totalorder %s120, %s122
      %p129 = scmp.eq.s32.totalorder %s28, 1
      %p130 = por %p128, %p129
      %p131 = scmp.ne.s32.totalorder %s122, %s123
      %p132 = scmp.eq.s32.totalorder %s28, 0
      %p133 = por %p131, %p132
      %p134 = scmp.ne.s32.totalorder %s122, %s123
      %p135 = scmp.eq.s32.totalorder %s29, 1
      %p136 = por %p134, %p135
      %p138 = scmp.ne.s32.totalorder %s123, %s137
      %p139 = scmp.eq.s32.totalorder %s29, 0
      %p140 = por %p138, %p139
      %s142 = sadd.s32 %s141, 1
      %p145 = scmp.eq.s32.totalorder %s23, 1
      %p146 = scmp.ne.s32.totalorder %s141, %s143
      %p147 = scmp.eq.s32.totalorder %s23, 0
      %p148 = por %p146, %p147
      %p149 = scmp.ne.s32.totalorder %s141, %s143
      %p150 = scmp.eq.s32.totalorder %s28, 1
      %p151 = por %p149, %p150
      %p152 = scmp.ne.s32.totalorder %s143, %s144
      %p153 = scmp.eq.s32.totalorder %s28, 0
      %p154 = por %p152, %p153
      %p155 = scmp.ne.s32.totalorder %s143, %s144
      %p156 = scmp.eq.s32.totalorder %s29, 1
      %p157 = por %p155, %p156
      %p159 = scmp.ne.s32.totalorder %s144, %s158
      %p160 = scmp.eq.s32.totalorder %s29, 0
      %p161 = por %p159, %p160
      %s163 = sadd.s32 %s162, 1
      %p166 = scmp.eq.s32.totalorder %s23, 1
      %p167 = scmp.ne.s32.totalorder %s162, %s164
      %p168 = scmp.eq.s32.totalorder %s23, 0
      %p169 = por %p167, %p168
      %p170 = scmp.ne.s32.totalorder %s162, %s164
      %p171 = scmp.eq.s32.totalorder %s28, 1
      %p172 = por %p170, %p171
      %p173 = scmp.ne.s32.totalorder %s164, %s165
      %p174 = scmp.eq.s32.totalorder %s28, 0
      %p175 = por %p173, %p174
      %p176 = scmp.ne.s32.totalorder %s164, %s165
      %p177 = scmp.eq.s32.totalorder %s29, 1
      %p178 = por %p176, %p177
      %p180 = scmp.ne.s32.totalorder %s165, %s179
      %p181 = scmp.eq.s32.totalorder %s29, 0
      %p182 = por %p180, %p181
      %s184 = sadd.s32 %s183, 1
      %p187 = scmp.eq.s32.totalorder %s23, 1
      %p188 = scmp.ne.s32.totalorder %s183, %s185
      %p189 = scmp.eq.s32.totalorder %s23, 0
      %p190 = por %p188, %p189
      %p191 = scmp.ne.s32.totalorder %s183, %s185
      %p192 = scmp.eq.s32.totalorder %s28, 1
      %p193 = por %p191, %p192
      %p194 = scmp.ne.s32.totalorder %s185, %s186
      %p195 = scmp.eq.s32.totalorder %s28, 0
      %p196 = por %p194, %p195
      %p197 = scmp.ne.s32.totalorder %s185, %s186
      %p198 = scmp.eq.s32.totalorder %s29, 1
      %p199 = por %p197, %p198
      %p201 = scmp.ne.s32.totalorder %s186, %s200
      %p202 = scmp.eq.s32.totalorder %s29, 0
      %p203 = por %p201, %p202
      %s205 = sadd.s32 %s204, 1
      %p208 = scmp.eq.s32.totalorder %s23, 1
      %p209 = scmp.ne.s32.totalorder %s204, %s206
      %p210 = scmp.eq.s32.totalorder %s23, 0
      %p211 = por %p209, %p210
      %p212 = scmp.ne.s32.totalorder %s204, %s206
      %p213 = scmp.eq.s32.totalorder %s28, 1
      %p214 = por %p212, %p213
      %p215 = scmp.ne.s32.totalorder %s206, %s207
      %p216 = scmp.eq.s32.totalorder %s28, 0
      %p217 = por %p215, %p216
      %p218 = scmp.ne.s32.totalorder %s206, %s207
      %p219 = scmp.eq.s32.totalorder %s29, 1
      %p220 = por %p218, %p219
      %p222 = scmp.ne.s32.totalorder %s207, %s221
      %p223 = scmp.eq.s32.totalorder %s29, 0
      %p224 = por %p222, %p223
      %s226 = sadd.s32 %s225, 1
      %p229 = scmp.eq.s32.totalorder %s23, 1
      %p230 = scmp.ne.s32.totalorder %s225, %s227
      %p231 = scmp.eq.s32.totalorder %s23, 0
      %p232 = por %p230, %p231
      %p233 = scmp.ne.s32.totalorder %s225, %s227
      %p234 = scmp.eq.s32.totalorder %s28, 1
      %p235 = por %p233, %p234
      %p236 = scmp.ne.s32.totalorder %s227, %s228
      %p237 = scmp.eq.s32.totalorder %s28, 0
      %p238 = por %p236, %p237
      %p239 = scmp.ne.s32.totalorder %s227, %s228
      %p240 = scmp.eq.s32.totalorder %s29, 1
      %p241 = por %p239, %p240
      %p243 = scmp.ne.s32.totalorder %s228, %s242
      %p244 = scmp.eq.s32.totalorder %s29, 0
      %p245 = por %p243, %p244
      %s247 = sadd.s32 %s246, 1
      %p250 = scmp.eq.s32.totalorder %s23, 1
      %p251 = scmp.ne.s32.totalorder %s246, %s248
      %p252 = scmp.eq.s32.totalorder %s23, 0
      %p253 = por %p251, %p252
      %p254 = scmp.ne.s32.totalorder %s246, %s248
      %p255 = scmp.eq.s32.totalorder %s28, 1
      %p256 = por %p254, %p255
      %p257 = scmp.ne.s32.totalorder %s248, %s249
      %p258 = scmp.eq.s32.totalorder %s28, 0
      %p259 = por %p257, %p258
      %p260 = scmp.ne.s32.totalorder %s248, %s249
      %p261 = scmp.eq.s32.totalorder %s29, 1
      %p262 = por %p260, %p261
      %p264 = scmp.ne.s32.totalorder %s249, %s263
      %p265 = scmp.eq.s32.totalorder %s29, 0
      %p266 = por %p264, %p265
      %s268 = sadd.s32 %s267, 1
      %p271 = scmp.eq.s32.totalorder %s23, 1
      %p272 = scmp.ne.s32.totalorder %s267, %s269
      %p273 = scmp.eq.s32.totalorder %s23, 0
      %p274 = por %p272, %p273
      %p275 = scmp.ne.s32.totalorder %s267, %s269
      %p276 = scmp.eq.s32.totalorder %s28, 1
      %p277 = por %p275, %p276
      %p278 = scmp.ne.s32.totalorder %s269, %s270
      %p279 = scmp.eq.s32.totalorder %s28, 0
      %p280 = por %p278, %p279
      %p281 = scmp.ne.s32.totalorder %s269, %s270
      %p282 = scmp.eq.s32.totalorder %s29, 1
      %p283 = por %p281, %p282
      %p285 = scmp.ne.s32.totalorder %s270, %s284
      %p286 = scmp.eq.s32.totalorder %s29, 0
      %p287 = por %p285, %p286
      %s289 = sadd.s32 %s288, 1
      %p292 = scmp.eq.s32.totalorder %s23, 1
      %p293 = scmp.ne.s32.totalorder %s288, %s290
      %p294 = scmp.eq.s32.totalorder %s23, 0
      %p295 = por %p293, %p294
      %p296 = scmp.ne.s32.totalorder %s288, %s290
      %p297 = scmp.eq.s32.totalorder %s28, 1
      %p298 = por %p296, %p297
      %p299 = scmp.ne.s32.totalorder %s290, %s291
      %p300 = scmp.eq.s32.totalorder %s28, 0
      %p301 = por %p299, %p300
      %p302 = scmp.ne.s32.totalorder %s290, %s291
      %p303 = scmp.eq.s32.totalorder %s29, 1
      %p304 = por %p302, %p303
      %p306 = scmp.ne.s32.totalorder %s291, %s305
      %p307 = scmp.eq.s32.totalorder %s29, 0
      %p308 = por %p306, %p307
      %s309 = ssub.s32 %s23, %s30
      %p310 = scmp.eq.s32.totalorder %s309, 0
      %s312 = sadd.s32 %s311, 1
      %s313 = scalar_select %p310, %s311, %s312
      %p316 = pneg %p310
      %p317 = scmp.eq.s32.totalorder %s23, 1
      %p318 = por %p316, %p317
      %p319 = scmp.ne.s32.totalorder %s311, %s314
      %p320 = scmp.eq.s32.totalorder %s23, 0
      %p321 = por %p319, %p320
      %p322 = scmp.ne.s32.totalorder %s311, %s314
      %p323 = scmp.eq.s32.totalorder %s28, 1
      %p324 = por %p322, %p323
      %p325 = scmp.ne.s32.totalorder %s314, %s315
      %p326 = scmp.eq.s32.totalorder %s28, 0
      %p327 = por %p325, %p326
      %p328 = scmp.ne.s32.totalorder %s314, %s315
      %p329 = scmp.eq.s32.totalorder %s29, 1
      %p330 = por %p328, %p329
      %p332 = scmp.ne.s32.totalorder %s315, %s331
      %p333 = scmp.eq.s32.totalorder %s29, 0
      %p334 = por %p332, %p333
      %p335 = scmp.le.s32.totalorder 1, %s23
      %p336 = scmp.lt.s32.totalorder %s23, 3
      %p337 = pnand %p335, %p336
      %p338 = pneg %p337
      // Predicated region
      $region9: #{tpu_custom_call.1} parent=5 // pred_check
        _
      $region10: #{tpu_custom_call.1} parent=5 // pred_check_branch
        %340 = sbr.rel (%p337) target = $region12
      $region11: #{tpu_custom_call.1} parent=5 // pred_region
        %s341 = ssub.s32 %s23, 1
        // Predicated region
        $region13: #{tpu_custom_call.1} parent=11 // pred_check
          %p342 = pneg %p70
        $region14: #{tpu_custom_call.1} parent=11 // pred_check_branch
          %344 = sbr.rel (%p342) target = $region16
        $region15: #{tpu_custom_call.1} parent=11 // pred_region
          _
        $region16: #{tpu_custom_call.1} parent=11 // pred_fallthru
          _
        // Predicated region
        $region17: #{tpu_custom_call.1} parent=11 // pred_check
          %p345 = pneg %p91
        $region18: #{tpu_custom_call.1} parent=11 // pred_check_branch
          %347 = sbr.rel (%p345) target = $region20
        $region19: #{tpu_custom_call.1} parent=11 // pred_region
          _
        $region20: #{tpu_custom_call.1} parent=11 // pred_fallthru
          _
        // Predicated region
        $region21: #{tpu_custom_call.1} parent=11 // pred_check
          %p348 = pneg %p112
        $region22: #{tpu_custom_call.1} parent=11 // pred_check_branch
          %350 = sbr.rel (%p348) target = $region24
        $region23: #{tpu_custom_call.1} parent=11 // pred_region
          _
        $region24: #{tpu_custom_call.1} parent=11 // pred_fallthru
          _
        // Predicated region
        $region25: #{tpu_custom_call.1} parent=11 // pred_check
          %p351 = pneg %p133
        $region26: #{tpu_custom_call.1} parent=11 // pred_check_branch
          %353 = sbr.rel (%p351) target = $region28
        $region27: #{tpu_custom_call.1} parent=11 // pred_region
          _
        $region28: #{tpu_custom_call.1} parent=11 // pred_fallthru
          _
        // Predicated region
        $region29: #{tpu_custom_call.1} parent=11 // pred_check
          %p354 = pneg %p154
        $region30: #{tpu_custom_call.1} parent=11 // pred_check_branch
          %356 = sbr.rel (%p354) target = $region32
        $region31: #{tpu_custom_call.1} parent=11 // pred_region
          _
        $region32: #{tpu_custom_call.1} parent=11 // pred_fallthru
          _
        // Predicated region
        $region33: #{tpu_custom_call.1} parent=11 // pred_check
          %p357 = pneg %p175
        $region34: #{tpu_custom_call.1} parent=11 // pred_check_branch
          %359 = sbr.rel (%p357) target = $region36
        $region35: #{tpu_custom_call.1} parent=11 // pred_region
          _
        $region36: #{tpu_custom_call.1} parent=11 // pred_fallthru
          _
        // Predicated region
        $region37: #{tpu_custom_call.1} parent=11 // pred_check
          %p360 = pneg %p196
        $region38: #{tpu_custom_call.1} parent=11 // pred_check_branch
          %362 = sbr.rel (%p360) target = $region40
        $region39: #{tpu_custom_call.1} parent=11 // pred_region
          _
        $region40: #{tpu_custom_call.1} parent=11 // pred_fallthru
          _
        // Predicated region
        $region41: #{tpu_custom_call.1} parent=11 // pred_check
          %p363 = pneg %p217
        $region42: #{tpu_custom_call.1} parent=11 // pred_check_branch
          %365 = sbr.rel (%p363) target = $region44
        $region43: #{tpu_custom_call.1} parent=11 // pred_region
          _
        $region44: #{tpu_custom_call.1} parent=11 // pred_fallthru
          _
        // Predicated region
        $region45: #{tpu_custom_call.1} parent=11 // pred_check
          %p366 = pneg %p238
        $region46: #{tpu_custom_call.1} parent=11 // pred_check_branch
          %368 = sbr.rel (%p366) target = $region48
        $region47: #{tpu_custom_call.1} parent=11 // pred_region
          _
        $region48: #{tpu_custom_call.1} parent=11 // pred_fallthru
          _
        // Predicated region
        $region49: #{tpu_custom_call.1} parent=11 // pred_check
          %p369 = pneg %p259
        $region50: #{tpu_custom_call.1} parent=11 // pred_check_branch
          %371 = sbr.rel (%p369) target = $region52
        $region51: #{tpu_custom_call.1} parent=11 // pred_region
          _
        $region52: #{tpu_custom_call.1} parent=11 // pred_fallthru
          _
        // Predicated region
        $region53: #{tpu_custom_call.1} parent=11 // pred_check
          %p372 = pneg %p280
        $region54: #{tpu_custom_call.1} parent=11 // pred_check_branch
          %374 = sbr.rel (%p372) target = $region56
        $region55: #{tpu_custom_call.1} parent=11 // pred_region
          _
        $region56: #{tpu_custom_call.1} parent=11 // pred_fallthru
          _
        // Predicated region
        $region57: #{tpu_custom_call.1} parent=11 // pred_check
          %p375 = pneg %p301
        $region58: #{tpu_custom_call.1} parent=11 // pred_check_branch
          %377 = sbr.rel (%p375) target = $region60
        $region59: #{tpu_custom_call.1} parent=11 // pred_region
          %379 = vsyncadd [#allocation3], 0
          %s380 = sshll.u32 %s12, 4
          %s381 = int_to_ptr.hbm [resolvable:$true] %s380
          %s382 = sshll.u32 [#allocation2], 4
          %s383 = int_to_ptr.vmem [resolvable:$true] %s382
          %388 = dma.hbm_to_vmem [thread:$0]  %s381, 2176, %s383, [#allocation3], 128, 128, 8
        $region60: #{tpu_custom_call.1} parent=11 // pred_fallthru
          _
      $region12: #{tpu_custom_call.1} parent=5 // pred_fallthru
        _
      %p389 = scmp.lt.s32.totalorder %s23, 2
      // Predicated region
      $region61: #{tpu_custom_call.1} parent=5 // pred_check
        %p390 = pneg %p389
      $region62: #{tpu_custom_call.1} parent=5 // pred_check_branch
        %392 = sbr.rel (%p390) target = $region64
      $region63: #{tpu_custom_call.1} parent=5 // pred_region
        // Predicated region
        $region65: #{tpu_custom_call.1} parent=63 // pred_check
          %p393 = pneg %p43
        $region66: #{tpu_custom_call.1} parent=63 // pred_check_branch
          %395 = sbr.rel (%p393) target = $region68
        $region67: #{tpu_custom_call.1} parent=63 // pred_region
          %p396 = scmp.lt.s32.totalorder %s23, 1
          %s397 = scalar_select %p396, %s23, 1
          %s398 = smul.addr %s397, 2
          %s399 = smul.addr %s398, 4
          %s400 = scalar_lea.vmem %s0, %s399
        $region68: #{tpu_custom_call.1} parent=63 // pred_fallthru
          _
      $region64: #{tpu_custom_call.1} parent=5 // pred_fallthru
        _
      %p401 = scmp.le.s32.totalorder 1, %s23
      %p402 = scmp.lt.s32.totalorder %s23, 3
      %p403 = pnand %p401, %p402
      %p404 = pneg %p403
      // Predicated region
      $region69: #{tpu_custom_call.1} parent=5 // pred_check
        _
      $region70: #{tpu_custom_call.1} parent=5 // pred_check_branch
        %406 = sbr.rel (%p403) target = $region72
      $region71: #{tpu_custom_call.1} parent=5 // pred_region
        %s407 = ssub.s32 %s23, 1
        // Predicated region
        $region73: #{tpu_custom_call.1} parent=71 // pred_check
          %p408 = pneg %p301
        $region74: #{tpu_custom_call.1} parent=71 // pred_check_branch
          %410 = sbr.rel (%p408) target = $region76
        $region75: #{tpu_custom_call.1} parent=71 // pred_region
          %412 = dma.done [#allocation3], 2176
        $region76: #{tpu_custom_call.1} parent=71 // pred_fallthru
          _
        %p413 = scmp.lt.s32.totalorder %s28, 1
        %s414 = scalar_select %p413, %s28, 1
        %s415 = smul.addr %s414, 2
        %s416 = smul.addr %s415, 4
        %s417 = scalar_lea.vmem %s0, %s416
        %p418 = pneg %p49
        %p419 = pneg %p46
        %p420 = pneg %p70
        %p421 = pneg %p67
        %p422 = pneg %p91
        %p423 = pneg %p88
        %p424 = pneg %p112
        %p425 = pneg %p109
        %p426 = pneg %p133
        %p427 = pneg %p130
        %p428 = pneg %p154
        %p429 = pneg %p151
        %p430 = pneg %p175
        %p431 = pneg %p172
        %p432 = pneg %p196
        %p433 = pneg %p193
        %p434 = pneg %p217
        %p435 = pneg %p214
        %p436 = pneg %p238
        %p437 = pneg %p235
        %p438 = pneg %p259
        %p439 = pneg %p256
        %p440 = pneg %p280
        %p441 = pneg %p277
        %p442 = pneg %p301
        %p443 = pneg %p298
        %p444 = pneg %p327
        %p445 = pneg %p324
        %s446 = sand.u32 %s314, 1
        %s447 = scalar_lea.sflag [#allocation4], %s446
        %s448 = sand.u32 %s314, 1
        %s449 = smul.addr %s448, 8
        %s450 = scalar_lea.vmem [#allocation5], %s449
        %p451 = scmp.lt.s32.totalorder %s28, 1
        %s452 = scalar_select %p451, %s28, 1
        %s453 = smul.addr %s452, 2
        %s454 = smul.addr %s453, 4
        %s455 = scalar_lea.vmem %s0, %s454
        %v456 = vld [vmem:[%s455] sm:$0xff]
        %v457 = vld [vmem:[%s1] sm:$0xf]
        %v458 = vld [vmem:[%s2] sm:$0xff]
        %v459 = vld [vmem:[%s3] sm:$0xff]
        %461 = vset.pattern.permute.xlu0 0
        %462 = vperm.xlu0 %461, %v457
        %v463 = vpop.permute.xlu0 %462
        %v465 = vunpack.c.l.s4 839922192
        %v466 = vunpack.c.0.s8 %v465
        %v467 = vperm.slane %v463, %v466
        %v469 = vmul.f32 %v456, %v467
        %470 = vset.pattern.permute.xlu0 1
        %471 = vperm.xlu0 %470, %v457
        %v472 = vpop.permute.xlu0 %471
        %v474 = vunpack.c.l.s4 839922192
        %v475 = vunpack.c.0.s8 %v474
        %v476 = vperm.slane %v472, %v475
        %v478 = vmul.f32 %v456, %v476
        %480 = vrot.lane.b32.xlu0 %v478, 127
        %v481 = vpop.permute.xlu0 %480
        %v482 = vrot.slane %v481, 4
        %vm483 = vcmask 1039360
        %v484 = vsel %vm483, %v481, %v482
        %v486 = vadd.f32 %v469, %v484
        %487 = vset.pattern.permute.xlu0 2
        %488 = vperm.xlu0 %487, %v457
        %v489 = vpop.permute.xlu0 %488
        %v491 = vunpack.c.l.s4 839922192
        %v492 = vunpack.c.0.s8 %v491
        %v493 = vperm.slane %v489, %v492
        %v495 = vmul.f32 %v456, %v493
        %497 = vrot.lane.b32.xlu0 %v495, 126
        %v498 = vpop.permute.xlu0 %497
        %v499 = vrot.slane %v498, 4
        %vm500 = vcmask 1031168
        %v501 = vsel %vm500, %v498, %v499
        %v503 = vadd.f32 %v486, %v501
        %505 = vset.pattern.permute.xlu0 0
        %506 = vperm.xlu0 %505, %v458
        %v507 = vpop.permute.xlu0 %506
        %v510 = vperm.slane %v503, 0
        %v511 = vperm.slane %v503, 4
        %v514 = vperm.slane %v510, 0
        %v515 = vperm.slane %v511, 0
        %v516 = vmul.f32 %v507, %v514
        %v517 = vmul.f32 %v507, %v515
        %518 = vset.pattern.permute.xlu0 1
        %519 = vperm.xlu0 %518, %v458
        %v520 = vpop.permute.xlu0 %519
        %v522 = vperm.slane %v503, 1
        %v523 = vperm.slane %v503, 5
        %v526 = vperm.slane %v522, 1
        %v527 = vperm.slane %v523, 1
        %v528 = vmul.f32 %v520, %v526
        %v529 = vmul.f32 %v520, %v527
        %v530 = vadd.f32 %v516, %v528
        %v531 = vadd.f32 %v517, %v529
        %532 = vset.pattern.permute.xlu0 2
        %533 = vperm.xlu0 %532, %v458
        %v534 = vpop.permute.xlu0 %533
        %v536 = vperm.slane %v503, 2
        %v537 = vperm.slane %v503, 6
        %v540 = vperm.slane %v536, 2
        %v541 = vperm.slane %v537, 2
        %v542 = vmul.f32 %v534, %v540
        %v543 = vmul.f32 %v534, %v541
        %v544 = vadd.f32 %v530, %v542
        %v545 = vadd.f32 %v531, %v543
        %546 = vset.pattern.permute.xlu0 3
        %547 = vperm.xlu0 %546, %v458
        %v548 = vpop.permute.xlu0 %547
        %v550 = vperm.slane %v503, 3
        %v551 = vperm.slane %v503, 7
        %v554 = vperm.slane %v550, 3
        %v555 = vperm.slane %v551, 3
        %v556 = vmul.f32 %v548, %v554
        %v557 = vmul.f32 %v548, %v555
        %v558 = vadd.f32 %v544, %v556
        %v559 = vadd.f32 %v545, %v557
        %561 = vset.pattern.permute.xlu0 0
        %562 = vperm.xlu0 %561, %v459
        %v563 = vpop.permute.xlu0 %562
        %v565 = vadd.f32 %v558, %v563
        %v566 = vadd.f32 %v559, %v563
        %v567 = vmax.f32 %v565, 0.0
        %v568 = vmax.f32 %v566, 0.0
        %v569 = vld [vmem:[%s4] sm:$0xff]
        %v570 = vld [vmem:[%s5] sm:$0xff]
        %v571 = vld [vmem:[%s6] sm:$0xff]
        %573 = vset.pattern.permute.xlu0 0
        %574 = vperm.xlu0 %573, %v569
        %v575 = vpop.permute.xlu0 %574
        %v577 = vmul.f32 %v567, %v575
        %v578 = vmul.f32 %v568, %v575
        %579 = vset.pattern.permute.xlu0 1
        %580 = vperm.xlu0 %579, %v569
        %v581 = vpop.permute.xlu0 %580
        %v583 = vmul.f32 %v567, %v581
        %v584 = vmul.f32 %v568, %v581
        %587 = vrot.lane.b32.xlu0 %v583, 127
        %v588 = vpop.permute.xlu0 %587
        %589 = vrot.lane.b32.xlu0 %v584, 127
        %v590 = vpop.permute.xlu0 %589
        %v591 = vsel %vm483, %v588, %v590
        %v594 = vadd.f32 %v577, %v591
        %v595 = vadd.f32 %v578, %v590
        %596 = vset.pattern.permute.xlu0 2
        %597 = vperm.xlu0 %596, %v569
        %v598 = vpop.permute.xlu0 %597
        %v600 = vmul.f32 %v567, %v598
        %v601 = vmul.f32 %v568, %v598
        %604 = vrot.lane.b32.xlu0 %v600, 126
        %v605 = vpop.permute.xlu0 %604
        %606 = vrot.lane.b32.xlu0 %v601, 126
        %v607 = vpop.permute.xlu0 %606
        %v608 = vsel %vm500, %v605, %v607
        %v611 = vadd.f32 %v594, %v608
        %v612 = vadd.f32 %v595, %v607
        %614 = vset.pattern.permute.xlu0 0
        %615 = vperm.xlu0 %614, %v570
        %v616 = vpop.permute.xlu0 %615
        %v618 = vperm.slane %v611, 0
        %v619 = vperm.slane %v612, 0
        %v620 = vmul.f32 %v616, %v618
        %v621 = vmul.f32 %v616, %v619
        %622 = vset.pattern.permute.xlu0 1
        %623 = vperm.xlu0 %622, %v570
        %v624 = vpop.permute.xlu0 %623
        %v626 = vperm.slane %v611, 1
        %v627 = vperm.slane %v612, 1
        %v628 = vmul.f32 %v624, %v626
        %v629 = vmul.f32 %v624, %v627
        %v630 = vadd.f32 %v620, %v628
        %v631 = vadd.f32 %v621, %v629
        %632 = vset.pattern.permute.xlu0 2
        %633 = vperm.xlu0 %632, %v570
        %v634 = vpop.permute.xlu0 %633
        %v636 = vperm.slane %v611, 2
        %v637 = vperm.slane %v612, 2
        %v638 = vmul.f32 %v634, %v636
        %v639 = vmul.f32 %v634, %v637
        %v640 = vadd.f32 %v630, %v638
        %v641 = vadd.f32 %v631, %v639
        %642 = vset.pattern.permute.xlu0 3
        %643 = vperm.xlu0 %642, %v570
        %v644 = vpop.permute.xlu0 %643
        %v646 = vperm.slane %v611, 3
        %v647 = vperm.slane %v612, 3
        %v648 = vmul.f32 %v644, %v646
        %v649 = vmul.f32 %v644, %v647
        %v650 = vadd.f32 %v640, %v648
        %v651 = vadd.f32 %v641, %v649
        %652 = vset.pattern.permute.xlu0 4
        %653 = vperm.xlu0 %652, %v570
        %v654 = vpop.permute.xlu0 %653
        %v656 = vperm.slane %v611, 4
        %v657 = vperm.slane %v612, 4
        %v658 = vmul.f32 %v654, %v656
        %v659 = vmul.f32 %v654, %v657
        %v660 = vadd.f32 %v650, %v658
        %v661 = vadd.f32 %v651, %v659
        %662 = vset.pattern.permute.xlu0 5
        %663 = vperm.xlu0 %662, %v570
        %v664 = vpop.permute.xlu0 %663
        %v666 = vperm.slane %v611, 5
        %v667 = vperm.slane %v612, 5
        %v668 = vmul.f32 %v664, %v666
        %v669 = vmul.f32 %v664, %v667
        %v670 = vadd.f32 %v660, %v668
        %v671 = vadd.f32 %v661, %v669
        %672 = vset.pattern.permute.xlu0 6
        %673 = vperm.xlu0 %672, %v570
        %v674 = vpop.permute.xlu0 %673
        %v676 = vperm.slane %v611, 6
        %v677 = vperm.slane %v612, 6
        %v678 = vmul.f32 %v674, %v676
        %v679 = vmul.f32 %v674, %v677
        %v680 = vadd.f32 %v670, %v678
        %v681 = vadd.f32 %v671, %v679
        %682 = vset.pattern.permute.xlu0 7
        %683 = vperm.xlu0 %682, %v570
        %v684 = vpop.permute.xlu0 %683
        %v686 = vperm.slane %v611, 7
        %v687 = vperm.slane %v612, 7
        %v688 = vmul.f32 %v684, %v686
        %v689 = vmul.f32 %v684, %v687
        %v690 = vadd.f32 %v680, %v688
        %v691 = vadd.f32 %v681, %v689
        %693 = vset.pattern.permute.xlu0 0
        %694 = vperm.xlu0 %693, %v571
        %v695 = vpop.permute.xlu0 %694
        %v697 = vadd.f32 %v690, %v695
        %v698 = vadd.f32 %v691, %v695
        %v699 = vmax.f32 %v697, 0.0
        %v700 = vmax.f32 %v698, 0.0
        %v701 = vld [vmem:[%s7] sm:$0xff]
        %v702 = vld [vmem:[%s8] sm:$0xff]
        %v703 = vld [vmem:[%s9] sm:$0xff]
        %705 = vset.pattern.permute.xlu0 0
        %706 = vperm.xlu0 %705, %v701
        %v707 = vpop.permute.xlu0 %706
        %v709 = vmul.f32 %v699, %v707
        %710 = vset.pattern.permute.xlu0 1
        %711 = vperm.xlu0 %710, %v701
        %v712 = vpop.permute.xlu0 %711
        %v714 = vmul.f32 %v699, %v712
        %v715 = vmul.f32 %v700, %v712
        %718 = vrot.lane.b32.xlu0 %v714, 127
        %v719 = vpop.permute.xlu0 %718
        %720 = vrot.lane.b32.xlu0 %v715, 127
        %v721 = vpop.permute.xlu0 %720
        %v722 = vsel %vm483, %v719, %v721
        %v724 = vadd.f32 %v709, %v722
        %725 = vset.pattern.permute.xlu0 2
        %726 = vperm.xlu0 %725, %v701
        %v727 = vpop.permute.xlu0 %726
        %v729 = vmul.f32 %v699, %v727
        %v730 = vmul.f32 %v700, %v727
        %733 = vrot.lane.b32.xlu0 %v729, 126
        %v734 = vpop.permute.xlu0 %733
        %735 = vrot.lane.b32.xlu0 %v730, 126
        %v736 = vpop.permute.xlu0 %735
        %v737 = vsel %vm500, %v734, %v736
        %v739 = vadd.f32 %v724, %v737
        %741 = vset.pattern.permute.xlu0 0
        %742 = vperm.xlu0 %741, %v702
        %v743 = vpop.permute.xlu0 %742
        %v745 = vperm.slane %v739, 0
        %v746 = vmul.f32 %v743, %v745
        %747 = vset.pattern.permute.xlu0 1
        %748 = vperm.xlu0 %747, %v702
        %v749 = vpop.permute.xlu0 %748
        %v751 = vperm.slane %v739, 1
        %v752 = vmul.f32 %v749, %v751
        %v753 = vadd.f32 %v746, %v752
        %754 = vset.pattern.permute.xlu0 2
        %755 = vperm.xlu0 %754, %v702
        %v756 = vpop.permute.xlu0 %755
        %v758 = vperm.slane %v739, 2
        %v759 = vmul.f32 %v756, %v758
        %v760 = vadd.f32 %v753, %v759
        %761 = vset.pattern.permute.xlu0 3
        %762 = vperm.xlu0 %761, %v702
        %v763 = vpop.permute.xlu0 %762
        %v765 = vperm.slane %v739, 3
        %v766 = vmul.f32 %v763, %v765
        %v767 = vadd.f32 %v760, %v766
        %768 = vset.pattern.permute.xlu0 4
        %769 = vperm.xlu0 %768, %v702
        %v770 = vpop.permute.xlu0 %769
        %v772 = vperm.slane %v739, 4
        %v773 = vmul.f32 %v770, %v772
        %v774 = vadd.f32 %v767, %v773
        %775 = vset.pattern.permute.xlu0 5
        %776 = vperm.xlu0 %775, %v702
        %v777 = vpop.permute.xlu0 %776
        %v779 = vperm.slane %v739, 5
        %v780 = vmul.f32 %v777, %v779
        %v781 = vadd.f32 %v774, %v780
        %782 = vset.pattern.permute.xlu0 6
        %783 = vperm.xlu0 %782, %v702
        %v784 = vpop.permute.xlu0 %783
        %v786 = vperm.slane %v739, 6
        %v787 = vmul.f32 %v784, %v786
        %v788 = vadd.f32 %v781, %v787
        %789 = vset.pattern.permute.xlu0 7
        %790 = vperm.xlu0 %789, %v702
        %v791 = vpop.permute.xlu0 %790
        %v793 = vperm.slane %v739, 7
        %v794 = vmul.f32 %v791, %v793
        %v795 = vadd.f32 %v788, %v794
        %797 = vset.pattern.permute.xlu0 0
        %798 = vperm.xlu0 %797, %v703
        %v799 = vpop.permute.xlu0 %798
        %v801 = vadd.f32 %v795, %v799
        %v802 = vld [vmem:[#allocation2] sm:$0xff]
        %v803 = vld [vmem:[#allocation2 + $0x8] sm:$0xff]
        %v804 = vld [vmem:[#allocation2 + $0x10] sm:$0xff]
        %v805 = vld [vmem:[#allocation2 + $0x18] sm:$0xff]
        %v806 = vld [vmem:[#allocation2 + $0x20] sm:$0xff]
        %v807 = vld [vmem:[#allocation2 + $0x28] sm:$0xff]
        %v808 = vld [vmem:[#allocation2 + $0x30] sm:$0xff]
        %v809 = vld [vmem:[#allocation2 + $0x38] sm:$0xff]
        %v810 = vld [vmem:[#allocation2 + $0x40] sm:$0xff]
        %v811 = vld [vmem:[#allocation2 + $0x48] sm:$0xff]
        %v812 = vld [vmem:[#allocation2 + $0x50] sm:$0xff]
        %v813 = vld [vmem:[#allocation2 + $0x58] sm:$0xff]
        %v814 = vld [vmem:[#allocation2 + $0x60] sm:$0xff]
        %v815 = vld [vmem:[#allocation2 + $0x68] sm:$0xff]
        %v816 = vld [vmem:[#allocation2 + $0x70] sm:$0xff]
        %v817 = vld [vmem:[#allocation2 + $0x78] sm:$0xff]
        %v818 = vld [vmem:[#allocation2 + $0x80] sm:$0x3f]
        %820 = vst [vmem:[#allocation1] ss:$2 sm:$0xff] %v456
        %v821 = vld.sshfl [vmem:[#allocation1] sm:$0xff pattern:$0x75316420]
        %v822 = vld.sshfl [vmem:[#allocation1 + $0x8] sm:$0xff pattern:$0x75316420]
        %vm824 = vcmask 48128
        %v825 = vsel %vm824, %v822, 0
        %vm827 = vcmask 1045504
        %v829 = vsel %vm827, %v818, 0
        %831 = vmatpush.msra.mxu0 %v817
        %832 = vmatpush.msra.mxu0 %v816
        %833 = vmatpush.msra.mxu0 %v815
        %834 = vmatpush.msra.mxu0 %v814
        %835 = vmatpush.msra.mxu0 %v813
        %836 = vmatpush.msra.mxu0 %v812
        %837 = vmatpush.msra.mxu0 %v811
        %838 = vmatpush.msra.mxu0 %v810
        %839 = vmatpush.msra.mxu0 %v809
        %840 = vmatpush.msra.mxu0 %v808
        %841 = vmatpush.msra.mxu0 %v807
        %842 = vmatpush.msra.mxu0 %v806
        %843 = vmatpush.msra.mxu0 %v805
        %844 = vmatpush.msra.mxu0 %v804
        %845 = vmatpush.msra.mxu0 %v803
        %846 = vmatpush.msra.mxu0 %v802
        %847 = vmatmul.f32.gmra.mxu0 %v821
        %v848 = vpop.f32.mrf.mxu0
        %v849 = vadd.f32 0.0, %v848
        %850 = vdwg.mxu0
        %851 = vmatpush.msra.mxu0 0.0
        %852 = vmatpush.msra.mxu0 0.0
        %853 = vmatpush.msra.mxu0 0.0
        %854 = vmatpush.msra.mxu0 0.0
        %855 = vmatpush.msra.mxu0 0.0
        %856 = vmatpush.msra.mxu0 0.0
        %857 = vmatpush.msra.mxu0 0.0
        %858 = vmatpush.msra.mxu0 0.0
        %859 = vmatpush.msra.mxu0 0.0
        %860 = vmatpush.msra.mxu0 0.0
        %861 = vmatpush.msra.mxu0 0.0
        %862 = vmatpush.msra.mxu0 0.0
        %863 = vmatpush.msra.mxu0 0.0
        %864 = vmatpush.msra.mxu0 0.0
        %865 = vmatpush.msra.mxu0 0.0
        %866 = vmatpush.msra.mxu0 %v829
        %867 = vmatmul.f32.gmra.mxu0 %v825
        %v868 = vpop.f32.mrf.mxu0
        %v869 = vadd.f32 %v849, %v868
        %870 = vdwg.mxu0
        %v871 = vld [vmem:[%s10] sm:$0xff]
        %v872 = vld [vmem:[%s11] sm:$0xff]
        %874 = vset.pattern.permute.xlu0 0
        %875 = vperm.xlu0 %874, %v871
        %v876 = vpop.permute.xlu0 %875
        %v878 = vperm.slane %v869, 0
        %v879 = vmul.f32 %v876, %v878
        %880 = vset.pattern.permute.xlu0 1
        %881 = vperm.xlu0 %880, %v871
        %v882 = vpop.permute.xlu0 %881
        %v884 = vperm.slane %v869, 1
        %v885 = vmul.f32 %v882, %v884
        %v886 = vadd.f32 %v879, %v885
        %887 = vset.pattern.permute.xlu0 2
        %888 = vperm.xlu0 %887, %v871
        %v889 = vpop.permute.xlu0 %888
        %v891 = vperm.slane %v869, 2
        %v892 = vmul.f32 %v889, %v891
        %v893 = vadd.f32 %v886, %v892
        %894 = vset.pattern.permute.xlu0 3
        %895 = vperm.xlu0 %894, %v871
        %v896 = vpop.permute.xlu0 %895
        %v898 = vperm.slane %v869, 3
        %v899 = vmul.f32 %v896, %v898
        %v900 = vadd.f32 %v893, %v899
        %902 = vset.pattern.permute.xlu0 0
        %903 = vperm.xlu0 %902, %v872
        %v904 = vpop.permute.xlu0 %903
        %v906 = vadd.f32 %v900, %v904
        %v907 = vadd.f32 %v801, %v906
        %v908 = vmax.f32 %v907, 0.0
        %909 = vst [vmem:[%s450] sm:$0xff] %v908
        %s910 = sand.u32 %s314, 1
        %s911 = scalar_lea.sflag [#allocation4], %s910
        %s912 = sand.u32 %s314, 1
        %s913 = smul.addr %s912, 8
        %s914 = scalar_lea.vmem [#allocation5], %s913
        // Predicated region
        $region77: #{tpu_custom_call.1} parent=71 // pred_check
          %p915 = pneg %p324
        $region78: #{tpu_custom_call.1} parent=71 // pred_check_branch
          %917 = sbr.rel (%p915) target = $region80
        $region79: #{tpu_custom_call.1} parent=71 // pred_region
          %919 = vsyncadd %s911, 0
          %s920 = smul.addr %s28, 8
          %s921 = scalar_lea.hbm %s13, %s920
          %s923 = sshll.u32 %s914, 4
          %s924 = int_to_ptr.vmem [resolvable:$true] %s923
          %s925 = sshll.u32 %s921, 4
          %s926 = int_to_ptr.hbm [resolvable:$true] %s925
          %928 = dma.vmem_to_hbm [thread:$0]  %s924, 128, %s926, %s911
        $region80: #{tpu_custom_call.1} parent=71 // pred_fallthru
          _
      $region72: #{tpu_custom_call.1} parent=5 // pred_fallthru
        _
      %p929 = scmp.le.s32.totalorder 2, %s23
      // Predicated region
      $region81: #{tpu_custom_call.1} parent=5 // pred_check
        %p930 = pneg %p929
      $region82: #{tpu_custom_call.1} parent=5 // pred_check_branch
        %932 = sbr.rel (%p930) target = $region84
      $region83: #{tpu_custom_call.1} parent=5 // pred_region
        %s933 = ssub.s32 %s23, 2
        // Predicated region
        $region85: #{tpu_custom_call.1} parent=83 // pred_check
          %p934 = pneg %p330
        $region86: #{tpu_custom_call.1} parent=83 // pred_check_branch
          %936 = sbr.rel (%p934) target = $region88
        $region87: #{tpu_custom_call.1} parent=83 // pred_region
          %s937 = sand.u32 %s315, 1
          %s938 = scalar_lea.sflag [#allocation4], %s937
          %s939 = sand.u32 %s315, 1
          %s940 = smul.addr %s939, 8
          %s941 = scalar_lea.vmem [#allocation5], %s940
          %943 = dma.done %s938, 128
        $region88: #{tpu_custom_call.1} parent=83 // pred_fallthru
          _
      $region84: #{tpu_custom_call.1} parent=5 // pred_fallthru
        _
    $region6: #{tpu_custom_call.1} parent=1 // loop_footer
      %s27 = sadd.s32 1, %s23
    $region7: #{tpu_custom_call.1} parent=1 // loop_footer_branch
      %22 = sbr.rel target = $region3
    $region8: #{tpu_custom_call.1} parent=1 // loop_exit
      _
    %944 = vsyncpa [#allocation3], 1
    %s945 = scalar_lea.sflag [#allocation3], 1
    %946 = vsyncpa %s945, 1
    %947 = vsyncpa [#allocation4], 1
    %s948 = scalar_lea.sflag [#allocation4], 1
    %949 = vsyncpa %s948, 1

</llo_original>
